<compile_context>
chip_gen: v7x
topology: tpu7x:2x2x1
jax: 0.10.0
libtpu: 0.0.40
codegen_flags: <defaults>
</compile_context>

<pallas_src>
import math
import functools

import jax
import jax.numpy as jnp
from jax import lax
from jax.experimental import pallas as pl
from jax.experimental.pallas import tpu as pltpu

F32 = jnp.float32
BF16 = jnp.bfloat16


# ----------------------------- in-kernel helpers -----------------------------

def _layernorm(x, w, b, eps):
    # TF-style layernorm (eps inside sqrt), matching the PyTorch LayerNorm.
    u = jnp.mean(x, axis=-1, keepdims=True)
    s = jnp.mean(jnp.square(x - u), axis=-1, keepdims=True)
    return w * ((x - u) / jnp.sqrt(s + eps)) + b


def _gelu(x):
    return 0.5 * x * (1.0 + jnp.tanh(math.sqrt(2.0 / math.pi)
                                     * (x + 0.044715 * x * x * x)))


# --------------------------------- kernels ------------------------------------

def embed_kernel(x_ref, w_ref, pos_ref, o_ref, acc_ref):
    # x_ref: (TB, S, TV) bf16   w_ref: (TV, E) bf16   pos_ref: (S, E) f32
    # o_ref: (TB, S, E) f32     acc_ref: (TB, S, E) f32 scratch
    v = pl.program_id(1)
    TB, S, TV = x_ref.shape
    E = w_ref.shape[1]
    part = jnp.dot(x_ref[...].reshape(TB * S, TV), w_ref[...],
                   preferred_element_type=F32).reshape(TB, S, E)

    @pl.when(v == 0)
    def _():
        acc_ref[...] = part + pos_ref[...]

    @pl.when(v > 0)
    def _():
        acc_ref[...] = acc_ref[...] + part

    @pl.when(v == pl.num_programs(1) - 1)
    def _():
        o_ref[...] = acc_ref[...]


def fused_blocks_kernel(x_ref,
                        wqkv_ref, wpr_ref, wfc_ref, wp2_ref,
                        vec_ref, bqkv_ref, bfc_ref, lnf_ref,
                        o_ref, h_sc,
                        *, n_head, eps):
    l = pl.program_id(1)
    TB, S, E = x_ref.shape
    H = n_head
    Dh = E // H
    M = TB * S

    # Load the embedded input into the resident residual stream at layer 0.
    @pl.when(l == 0)
    def _():
        h_sc[...] = x_ref[...].reshape(M, E)

    x = h_sc[...]                                    # (M, E) f32 residual stream

    # packed per-layer vectors: ln1w, ln1b, bpr, ln2w, ln2b, bp2
    vec = vec_ref[0]                                 # (6, E) f32
    ln1w, ln1b = vec[0:1], vec[1:2]
    bpr = vec[2:3]
    ln2w, ln2b = vec[3:4], vec[4:5]
    bp2 = vec[5:6]

    # causal mask generated in-kernel (no HBM operand, no VMEM buffer)
    row = lax.broadcasted_iota(jnp.int32, (S, S), 0)
    col = lax.broadcasted_iota(jnp.int32, (S, S), 1)
    causal = (row >= col)[None]                      # (1, S, S) bool

    # ---- attention branch (Attention with scale=True, no past) ----
    hn = _layernorm(x, ln1w, ln1b, eps)
    qkv = jnp.dot(hn.astype(BF16), wqkv_ref[0],
                  preferred_element_type=F32) + bqkv_ref[0]      # (M, 3E) f32
    scale = 1.0 / math.sqrt(Dh)
    q_all = (qkv[:, :E] * scale).astype(BF16)        # fold 1/sqrt(Dh) into q
    k_all = qkv[:, E:2 * E].astype(BF16)
    v_all = qkv[:, 2 * E:3 * E].astype(BF16)

    # per-head attention, batched over the TB batch rows (3-D einsums only)
    a_heads = []
    for h in range(H):
        sl = slice(h * Dh, (h + 1) * Dh)
        qh = q_all[:, sl].reshape(TB, S, Dh)
        kh = k_all[:, sl].reshape(TB, S, Dh)
        vh = v_all[:, sl].reshape(TB, S, Dh)
        s = jnp.einsum('bqd,bkd->bqk', qh, kh,
                       preferred_element_type=F32)               # (TB, S, S) f32
        s = jnp.where(causal, s, -1e10)
        s = s - jnp.max(s, axis=-1, keepdims=True)
        p = jnp.exp(s)
        p = p * pl.reciprocal(jnp.sum(p, axis=-1, keepdims=True), approx=True)
        ah = jnp.einsum('bqk,bkd->bqd', p.astype(BF16), vh,
                        preferred_element_type=F32)              # (TB, S, Dh) f32
        a_heads.append(ah.reshape(M, Dh))
    a = jnp.concatenate(a_heads, axis=-1)                        # merge_heads (M, E)

    a = jnp.dot(a.astype(BF16), wpr_ref[0],
                preferred_element_type=F32) + bpr
    x1 = x + a

    # ---- MLP branch ----
    hn2 = _layernorm(x1, ln2w, ln2b, eps)
    hf = jnp.dot(hn2.astype(BF16), wfc_ref[0],
                 preferred_element_type=F32) + bfc_ref[0]
    hf = _gelu(hf)
    m = jnp.dot(hf.astype(BF16), wp2_ref[0],
                preferred_element_type=F32) + bp2

    h_new = x1 + m
    h_sc[...] = h_new

    # final LayerNorm fused into the last layer step
    @pl.when(l == pl.num_programs(1) - 1)
    def _():
        out = _layernorm(h_new, lnf_ref[0:1], lnf_ref[1:2], eps)
        o_ref[...] = out.reshape(TB, S, E)


# ------------------------------- planning helpers -------------------------------

def _vmem_budget():
    cap = 64 << 20
    try:
        cap = int(pltpu.get_tpu_info().vmem_capacity_bytes)
    except Exception:
        pass
    # ~80% of physical VMEM: ~102 MiB on v5e/v6e (128 MiB), ~51 MiB on v7x (64 MiB)
    return max(32 << 20, (cap * 4) // 5)


def _fused_vmem_bytes(TB, S, E, n_head):
    del n_head
    M = TB * S
    weights = 2 * 12 * E * E * 2            # double-buffered bf16 weight matrices
    smalls = 2 * 8 * 13 * E * 4             # sublane-padded packed vectors + biases
    io = 4 * M * E * 4                      # x + out blocks, double-buffered
    scratch = M * E * 4                     # resident residual stream
    acts = 96 * M * E                       # per-layer activations (generous)
    scores = 16 * TB * S * S                # attention score working set (per head)
    return weights + smalls + io + scratch + acts + scores + (2 << 20)


def _pick_batch_block(B, S, E, n_head, budget):
    fits = [d for d in range(1, B + 1)
            if B % d == 0 and _fused_vmem_bytes(d, S, E, n_head) <= budget]
    if not fits:
        return 1
    # keep >= 2 steps on the parallel grid axis when possible (v7x has 2 TCs)
    pref = [d for d in fits if B // d >= 2]
    return max(pref) if pref else max(fits)


def _plan_vocab(V, TB, S, E, budget):
    def est(tv):
        return 2 * (TB * S * tv * 2 + tv * E * 2) + 3 * TB * S * E * 4 + (1 << 20)
    if est(V) <= budget:
        return V, V                          # full-dim blocks, no padding needed
    tv = 512
    for cand in (8192, 4096, 2048, 1024, 512):
        if est(cand) <= budget:
            tv = cand
            break
    v_pad = pl.cdiv(V, tv) * tv
    return tv, v_pad


# ------------------------------- kernel wrappers -------------------------------

def run_embed(x_bf16, w_vis_bf16, pos_emb, TB, budget):
    B, S, V = x_bf16.shape
    E = w_vis_bf16.shape[1]
    tv, v_pad = _plan_vocab(V, TB, S, E, budget)
    if v_pad != V:
        # zero-pad vocab axis to a multiple of the tile (exact: zero columns/rows)
        x_bf16 = jnp.pad(x_bf16, ((0, 0), (0, 0), (0, v_pad - V)))
        w_vis_bf16 = jnp.pad(w_vis_bf16, ((0, v_pad - V), (0, 0)))
    nV = v_pad // tv
    return pl.pallas_call(
        embed_kernel,
        out_shape=jax.ShapeDtypeStruct((B, S, E), F32),
        grid=(B // TB, nV),
        in_specs=[
            pl.BlockSpec((TB, S, tv), lambda b, v: (b, 0, v)),
            pl.BlockSpec((tv, E), lambda b, v: (v, 0)),
            pl.BlockSpec((S, E), lambda b, v: (0, 0)),
        ],
        out_specs=pl.BlockSpec((TB, S, E), lambda b, v: (b, 0, 0)),
        scratch_shapes=[pltpu.VMEM((TB, S, E), F32)],
        compiler_params=pltpu.CompilerParams(
            dimension_semantics=("parallel", "arbitrary"),
            vmem_limit_bytes=budget),
    )(x_bf16, w_vis_bf16, pos_emb)


def run_blocks(h, kp, *, n_head, eps, TB, budget):
    B, S, E = h.shape
    L = kp['wqkv'].shape[0]
    kern = functools.partial(fused_blocks_kernel, n_head=n_head, eps=eps)

    def lspec(arr):   # per-layer stacked (L, X, Y) tensor, indexed by the layer axis
        return pl.BlockSpec((1,) + arr.shape[1:], lambda b, l: (l, 0, 0))

    return pl.pallas_call(
        kern,
        out_shape=jax.ShapeDtypeStruct((B, S, E), F32),
        grid=(B // TB, L),
        in_specs=[
            pl.BlockSpec((TB, S, E), lambda b, l: (b, 0, 0)),      # hidden in
            lspec(kp['wqkv']), lspec(kp['wpr']),
            lspec(kp['wfc']), lspec(kp['wp2']),
            lspec(kp['vec']),                                      # packed LN/bias vecs
            lspec(kp['bqkv']), lspec(kp['bfc']),
            pl.BlockSpec((2, E), lambda b, l: (0, 0)),             # ln_f (w, b)
        ],
        out_specs=pl.BlockSpec((TB, S, E), lambda b, l: (b, 0, 0)),
        scratch_shapes=[pltpu.VMEM((TB * S, E), F32)],
        compiler_params=pltpu.CompilerParams(
            dimension_semantics=("parallel", "arbitrary"),
            vmem_limit_bytes=budget),
    )(h, kp['wqkv'], kp['wpr'], kp['wfc'], kp['wp2'],
      kp['vec'], kp['bqkv'], kp['bfc'], kp['lnf'])


# --------------------------- parameters & full forward ---------------------------

def init_params(key, V, E, L, n_positions):
    ks = jax.random.split(key, 12)
    n = lambda k, shape, s=0.02: jax.random.normal(k, shape, F32) * s
    return dict(
        w_vis=n(ks[0], (V, E)),                       # vis_embed_mat.weight^T
        pos=n(ks[1], (n_positions, E)),
        ln1w=1.0 + n(ks[6], (L, E), 0.1), ln1b=n(ks[7], (L, E), 0.1),
        wqkv=n(ks[2], (L, E, 3 * E)), bqkv=n(ks[8], (L, 3 * E)),
        wpr=n(ks[3], (L, E, E)), bpr=n(ks[9], (L, E)),
        ln2w=1.0 + n(ks[10], (L, E), 0.1), ln2b=n(ks[11], (L, E), 0.1),
        wfc=n(ks[4], (L, E, 4 * E)), bfc=jnp.zeros((L, 4 * E), F32),
        wp2=n(ks[5], (L, 4 * E, E)), bp2=jnp.zeros((L, E), F32),
        lnfw=jnp.ones((E,), F32), lnfb=jnp.zeros((E,), F32),
    )


def prepare_params(p):
    """One-time conversion of f32 master params into the kernel layout:
    bf16 matmul weights and packed per-layer LN/bias vectors."""
    vec = jnp.stack([p['ln1w'], p['ln1b'], p['bpr'],
                     p['ln2w'], p['ln2b'], p['bp2']], axis=1)     # (L, 6, E) f32
    return dict(
        w_vis=p['w_vis'].astype(BF16),
        pos=p['pos'],
        wqkv=p['wqkv'].astype(BF16),
        wpr=p['wpr'].astype(BF16),
        wfc=p['wfc'].astype(BF16),
        wp2=p['wp2'].astype(BF16),
        vec=vec,
        bqkv=p['bqkv'][:, None, :],                               # (L, 1, 3E)
        bfc=p['bfc'][:, None, :],                                 # (L, 1, 4E)
        lnf=jnp.stack([p['lnfw'], p['lnfb']], axis=0),            # (2, E)
    )


def coarse_transformer_forward(input_visits, kp, *, n_head, eps):
    # past=None, position_ids=None -> positions are arange(S) for every batch row.
    B, S, V = input_visits.shape
    E = kp['wqkv'].shape[1]
    budget = _vmem_budget()
    TB = _pick_batch_block(B, S, E, n_head, budget)
    pos_emb = kp['pos'][:S]
    # multi-hot 0/1 input is exact in bf16 -> halves the dominant embed HBM read
    h = run_embed(input_visits.astype(BF16), kp['w_vis'], pos_emb, TB, budget)
    return run_blocks(h, kp, n_head=n_head, eps=eps, TB=TB, budget=budget)


# ------------------------------ pure-JAX reference ------------------------------

def reference_forward(x, p, *, n_head, eps):
    B, S, V = x.shape
    E = p['w_vis'].shape[1]
    Dh = E // n_head
    L = p['wqkv'].shape[0]

    def ln(h, w, b):
        u = jnp.mean(h, -1, keepdims=True)
        s = jnp.mean((h - u) ** 2, -1, keepdims=True)
        return w * ((h - u) / jnp.sqrt(s + eps)) + b

    h = jnp.einsum('bsv,ve->bse', x, p['w_vis']) + p['pos'][:S][None]
    mask = jnp.tril(jnp.ones((S, S), F32))
    for l in range(L):
        hh = ln(h, p['ln1w'][l], p['ln1b'][l])
        qkv = hh @ p['wqkv'][l] + p['bqkv'][l]
        q, k, v = jnp.split(qkv, 3, axis=-1)
        q = q.reshape(B, S, n_head, Dh).transpose(0, 2, 1, 3)
        k = k.reshape(B, S, n_head, Dh).transpose(0, 2, 1, 3)
        v = v.reshape(B, S, n_head, Dh).transpose(0, 2, 1, 3)
        w_att = jnp.einsum('bhqd,bhkd->bhqk', q, k) / math.sqrt(Dh)
        w_att = w_att * mask - 1e10 * (1 - mask)
        w_att = jax.nn.softmax(w_att, axis=-1)
        a = jnp.einsum('bhqk,bhkd->bhqd', w_att, v)
        a = a.transpose(0, 2, 1, 3).reshape(B, S, E)
        a = a @ p['wpr'][l] + p['bpr'][l]
        h = h + a
        hh = ln(h, p['ln2w'][l], p['ln2b'][l])
        hf = hh @ p['wfc'][l] + p['bfc'][l]
        hf = 0.5 * hf * (1 + jnp.tanh(math.sqrt(2 / math.pi)
                                      * (hf + 0.044715 * hf ** 3)))
        h = h + hf @ p['wp2'][l] + p['bp2'][l]
    return ln(h, p['lnfw'], p['lnfb'])


if __name__ == "__main__":
    # small config consistent with the module
    B, S = 4, 8                  # batch, sequence (n_ctx >= S)
    V, E = 64, 32                # total_vocab_size, n_embd
    n_head, n_layer = 4, 2
    n_positions = 16
    eps = 1e-5                   # layer_norm_epsilon

    key = jax.random.PRNGKey(0)
    k_x, k_p = jax.random.split(key)
    # multi-hot-ish visit vectors (float input to the bias-free Linear)
    input_visits = (jax.random.uniform(k_x, (B, S, V), F32) < 0.1).astype(F32)

    params = init_params(k_p, V, E, n_layer, n_positions)
    kparams = prepare_params(params)          # one-time bf16 cast + vector packing

    out = coarse_transformer_forward(input_visits, kparams, n_head=n_head, eps=eps)
    out = jax.block_until_ready(out)

    ref = reference_forward(input_visits, params, n_head=n_head, eps=eps)
    assert out.shape == (B, S, E)
    max_err = float(jnp.max(jnp.abs(out - ref)))
    # bf16 MXU inputs + approx reciprocal -> slightly looser tolerance than pure f32
    assert jnp.allclose(out, ref, rtol=3e-2, atol=3e-2), \
        f"mismatch vs reference (max abs err {max_err})"

    print("KERNEL_OK")
</pallas_src>

<mosaic_0001>
module attributes {stable_mosaic.version = 11 : i64} {
  func.func @embed_kernel(%arg0: i32, %arg1: i32, %arg2: memref<2x8x64xbf16, #tpu.memory_space<vmem>>, %arg3: memref<64x32xbf16, #tpu.memory_space<vmem>>, %arg4: memref<8x32xf32, #tpu.memory_space<vmem>>, %arg5: memref<2x8x32xf32, #tpu.memory_space<vmem>>, %arg6: memref<2x8x32xf32, #tpu.memory_space<vmem>>) attributes {dimension_semantics = [#tpu.dimension_semantics<parallel>, #tpu.dimension_semantics<arbitrary>], iteration_bounds = array<i64: 2, 1>, scalar_prefetch = 0 : i64, scratch_operands = 1 : i64, tpu.core_type = #tpu.core_type<tc>, window_params = [{transform_indices = @transform_0, window_bounds = array<i64: 2, 8, 64>}, {transform_indices = @transform_1, window_bounds = array<i64: 64, 32>}, {pipeline_mode = #tpu.pipeline_mode<synchronous>, transform_indices = @transform_2, window_bounds = array<i64: 8, 32>}, {transform_indices = @transform_3, window_bounds = array<i64: 2, 8, 32>}]} {
    %c0 = arith.constant 0 : index
    %c0_0 = arith.constant 0 : index
    %c0_1 = arith.constant 0 : index
    %0 = vector.load %arg2[%c0, %c0_0, %c0_1] : memref<2x8x64xbf16, #tpu.memory_space<vmem>>, vector<2x8x64xbf16>
    %1 = vector.shape_cast %0 : vector<2x8x64xbf16> to vector<16x64xbf16>
    %c0_2 = arith.constant 0 : index
    %c0_3 = arith.constant 0 : index
    %2 = vector.load %arg3[%c0_2, %c0_3] : memref<64x32xbf16, #tpu.memory_space<vmem>>, vector<64x32xbf16>
    %cst = arith.constant dense<0.000000e+00> : vector<16x32xf32>
    %3 = tpu.matmul %1, %2, %cst {dimension_numbers = #tpu.dot_dimension_numbers<[1], [0], [0], [1], [0, 0, 1, 1], [], []>} : vector<16x64xbf16>, vector<64x32xbf16>, vector<16x32xf32> -> vector<16x32xf32>
    %4 = vector.shape_cast %3 : vector<16x32xf32> to vector<2x8x32xf32>
    %c0_i32 = arith.constant 0 : i32
    %5 = arith.cmpi eq, %arg1, %c0_i32 : i32
    %6 = arith.extui %5 : i1 to i32
    %c0_i32_4 = arith.constant 0 : i32
    %7 = arith.cmpi ne, %6, %c0_i32_4 : i32
    scf.if %7 {
      %c0_9 = arith.constant 0 : index
      %c0_10 = arith.constant 0 : index
      %14 = vector.load %arg4[%c0_9, %c0_10] : memref<8x32xf32, #tpu.memory_space<vmem>>, vector<8x32xf32>
      %15 = vector.shape_cast %14 : vector<8x32xf32> to vector<1x8x32xf32>
      %16 = vector.broadcast %15 : vector<1x8x32xf32> to vector<2x8x32xf32>
      %17 = arith.addf %4, %16 : vector<2x8x32xf32>
      %c0_11 = arith.constant 0 : index
      %c0_12 = arith.constant 0 : index
      %c0_13 = arith.constant 0 : index
      %18 = vector.load %arg6[%c0_11, %c0_12, %c0_13] : memref<2x8x32xf32, #tpu.memory_space<vmem>>, vector<2x8x32xf32>
      tpu.vector_store %arg6[%c0_11, %c0_12, %c0_13], %17 {strides = array<i32>} : memref<2x8x32xf32, #tpu.memory_space<vmem>>, vector<2x8x32xf32>,
    } else {
    }
    %c0_i32_5 = arith.constant 0 : i32
    %8 = arith.cmpi sgt, %arg1, %c0_i32_5 : i32
    %9 = arith.extui %8 : i1 to i32
    %c0_i32_6 = arith.constant 0 : i32
    %10 = arith.cmpi ne, %9, %c0_i32_6 : i32
    scf.if %10 {
      %c0_9 = arith.constant 0 : index
      %c0_10 = arith.constant 0 : index
      %c0_11 = arith.constant 0 : index
      %14 = vector.load %arg6[%c0_9, %c0_10, %c0_11] : memref<2x8x32xf32, #tpu.memory_space<vmem>>, vector<2x8x32xf32>
      %15 = arith.addf %14, %4 : vector<2x8x32xf32>
      %c0_12 = arith.constant 0 : index
      %c0_13 = arith.constant 0 : index
      %c0_14 = arith.constant 0 : index
      %16 = vector.load %arg6[%c0_12, %c0_13, %c0_14] : memref<2x8x32xf32, #tpu.memory_space<vmem>>, vector<2x8x32xf32>
      tpu.vector_store %arg6[%c0_12, %c0_13, %c0_14], %15 {strides = array<i32>} : memref<2x8x32xf32, #tpu.memory_space<vmem>>, vector<2x8x32xf32>,
    } else {
    }
    %c0_i32_7 = arith.constant 0 : i32
    %11 = arith.cmpi eq, %arg1, %c0_i32_7 : i32
    %12 = arith.extui %11 : i1 to i32
    %c0_i32_8 = arith.constant 0 : i32
    %13 = arith.cmpi ne, %12, %c0_i32_8 : i32
    scf.if %13 {
      %c0_9 = arith.constant 0 : index
      %c0_10 = arith.constant 0 : index
      %c0_11 = arith.constant 0 : index
      %14 = vector.load %arg6[%c0_9, %c0_10, %c0_11] : memref<2x8x32xf32, #tpu.memory_space<vmem>>, vector<2x8x32xf32>
      %c0_12 = arith.constant 0 : index
      %c0_13 = arith.constant 0 : index
      %c0_14 = arith.constant 0 : index
      %15 = vector.load %arg5[%c0_12, %c0_13, %c0_14] : memref<2x8x32xf32, #tpu.memory_space<vmem>>, vector<2x8x32xf32>
      tpu.vector_store %arg5[%c0_12, %c0_13, %c0_14], %14 {strides = array<i32>} : memref<2x8x32xf32, #tpu.memory_space<vmem>>, vector<2x8x32xf32>,
    } else {
    }
    return
  }
  func.func @transform_0(%arg0: i32, %arg1: i32) -> (i32, i32, i32) {
    %c0_i32 = arith.constant 0 : i32
    %c0_i32_0 = arith.constant 0 : i32
    return %arg0, %c0_i32, %arg1 : i32, i32, i32
  }
  func.func @transform_1(%arg0: i32, %arg1: i32) -> (i32, i32) {
    %c0_i32 = arith.constant 0 : i32
    %c0_i32_0 = arith.constant 0 : i32
    return %arg1, %c0_i32 : i32, i32
  }
  func.func @transform_2(%arg0: i32, %arg1: i32) -> (i32, i32) {
    %c0_i32 = arith.constant 0 : i32
    %c0_i32_0 = arith.constant 0 : i32
    %c0_i32_1 = arith.constant 0 : i32
    return %c0_i32, %c0_i32_0 : i32, i32
  }
  func.func @transform_3(%arg0: i32, %arg1: i32) -> (i32, i32, i32) {
    %c0_i32 = arith.constant 0 : i32
    %c0_i32_0 = arith.constant 0 : i32
    %c0_i32_1 = arith.constant 0 : i32
    return %arg0, %c0_i32, %c0_i32_0 : i32, i32, i32
  }
}

</mosaic_0001>

<llo_original>
// kernel: tpu_custom_call.1
$region0: #{tpu_custom_call.1}
  #allocation0 [shape = 'u32[]', space=smem, size = 0x4, offset = 0x4, fixed_abs, tag = 'smem constant byte address 0x4 - core index']
  #allocation1 [shape = 'u32[144,128]{1,0:T(1,128)}', space=vmem, size = 0x12000, scoped, tag = 'internal scratch']
  #allocation2 [shape = 'f32[2,8,32]{2,1,0:T(8,128)}', space=vmem, size = 0x2000, scoped, tag = 'scratch operand']
  %s0 = inlined_call_operand.vmem [shape: bf16[4,8,64], index: 0, kind: input, shape index: {}]
  %s1 = inlined_call_operand.vmem [shape: bf16[64,32], index: 1, kind: input, shape index: {}]
  %s2 = inlined_call_operand.vmem [shape: f32[8,32], index: 2, kind: input, shape index: {}]
  %s3 = inlined_call_operand.hbm [shape: f32[4,8,32], index: 3, kind: output, shape index: {}]
  %s4 = sld [smem:[#allocation0]]
  $region57: #{tpu_custom_call.1} parent=0
    _
  %s6 = ssub.s32 1, %s4
  %s7 = scalar_select 0, %s6, %s4
  $region1: #{tpu_custom_call.1} parent=0
    #allocation3 [shape = 'u8[16384]{0}', space=vmem, size = 0x4000, scoped, tag = 'output window, operand 0']
    #allocation4 [shape = 's32[2]{0}', space=sflag, size = 0x8, scoped, tag = 'scoped memory for tpu_custom_call.1']
    %8 = vsyncpa [#allocation4], 0
    %s9 = scalar_lea.sflag [#allocation4], 1
    %10 = vsyncpa %s9, 0
    loop: start=0, step=1, limit=4
    $region2: #{tpu_custom_call.1} parent=1 // loop_pre_header
      _
    $region3: #{tpu_custom_call.1} parent=1 // loop_header
      %s12 = sphi 0, %s16
      %p13 = scmp.ge.s32.totalorder %s12, 4
      %s19 = sphi 0, %s31
      %s20 = sphi 0, %s27
      %s21 = sphi 0, %s19
      %s22 = sphi 0, %s20
      %s23 = sphi 0, %s21
      %s24 = sphi 0, %s22
      %s36 = sphi 0, %s38
      %s39 = sphi 0, %s36
      %s40 = sphi 0, %s39
      %s56 = sphi 0, %s40
      %s62 = sphi 0, %s64
      %s65 = sphi 0, %s62
      %s66 = sphi 0, %s65
      %s82 = sphi 0, %s66
      %s86 = sphi 0, %s86
      %s88 = sphi 0, %s86
      %s89 = sphi 0, %s88
      %s103 = sphi 0, %s89
      %s109 = sphi 0, %s111
      %s112 = sphi 0, %s109
      %s113 = sphi 0, %s112
      %s129 = sphi 0, %s113
    $region4: #{tpu_custom_call.1} parent=1 // loop_header_branch
      %15 = sbr.rel (%p13) target = $region8
    $region5: #{tpu_custom_call.1} parent=1 // loop_body
      %s17 = ssub.s32 %s12, 1
      %s18 = ssub.s32 %s12, 2
      %s25 = sadd.s32 1, %s20
      %p26 = scmp.ge.s32.totalorder %s25, 1
      %s27 = scalar_select %p26, 0, %s25
      %s28 = sadd.s32 1, %s19
      %s29 = scalar_select %p26, %s28, %s19
      %p30 = scmp.ge.s32.totalorder %s29, 2
      %s31 = scalar_select %p30, 0, %s29
      %s32 = ssub.s32 %s19, %s31
      %s33 = ssub.s32 %s20, %s27
      %s34 = sor.u32 %s32, %s33
      %p35 = scmp.eq.s32.totalorder %s34, 0
      %s37 = sadd.s32 %s36, 1
      %s38 = scalar_select %p35, %s36, %s37
      %p41 = pneg %p35
      %p42 = scmp.eq.s32.totalorder %s12, 1
      %p43 = por %p41, %p42
      %p44 = scmp.ne.s32.totalorder %s36, %s39
      %p45 = scmp.eq.s32.totalorder %s12, 0
      %p46 = por %p44, %p45
      %p47 = scmp.ne.s32.totalorder %s36, %s39
      %p48 = scmp.eq.s32.totalorder %s17, 1
      %p49 = por %p47, %p48
      %p50 = scmp.ne.s32.totalorder %s39, %s40
      %p51 = scmp.eq.s32.totalorder %s17, 0
      %p52 = por %p50, %p51
      %p53 = scmp.ne.s32.totalorder %s39, %s40
      %p54 = scmp.eq.s32.totalorder %s18, 1
      %p55 = por %p53, %p54
      %p57 = scmp.ne.s32.totalorder %s40, %s56
      %p58 = scmp.eq.s32.totalorder %s18, 0
      %p59 = por %p57, %p58
      %s60 = ssub.s32 %s20, %s27
      %p61 = scmp.eq.s32.totalorder %s60, 0
      %s63 = sadd.s32 %s62, 1
      %s64 = scalar_select %p61, %s62, %s63
      %p67 = pneg %p61
      %p68 = scmp.eq.s32.totalorder %s12, 1
      %p69 = por %p67, %p68
      %p70 = scmp.ne.s32.totalorder %s62, %s65
      %p71 = scmp.eq.s32.totalorder %s12, 0
      %p72 = por %p70, %p71
      %p73 = scmp.ne.s32.totalorder %s62, %s65
      %p74 = scmp.eq.s32.totalorder %s17, 1
      %p75 = por %p73, %p74
      %p76 = scmp.ne.s32.totalorder %s65, %s66
      %p77 = scmp.eq.s32.totalorder %s17, 0
      %p78 = por %p76, %p77
      %p79 = scmp.ne.s32.totalorder %s65, %s66
      %p80 = scmp.eq.s32.totalorder %s18, 1
      %p81 = por %p79, %p80
      %p83 = scmp.ne.s32.totalorder %s66, %s82
      %p84 = scmp.eq.s32.totalorder %s18, 0
      %p85 = por %p83, %p84
      %s87 = sadd.s32 %s86, 1
      %p90 = scmp.eq.s32.totalorder %s12, 1
      %p91 = scmp.ne.s32.totalorder %s86, %s88
      %p92 = scmp.eq.s32.totalorder %s12, 0
      %p93 = por %p91, %p92
      %p94 = scmp.ne.s32.totalorder %s86, %s88
      %p95 = scmp.eq.s32.totalorder %s17, 1
      %p96 = por %p94, %p95
      %p97 = scmp.ne.s32.totalorder %s88, %s89
      %p98 = scmp.eq.s32.totalorder %s17, 0
      %p99 = por %p97, %p98
      %p100 = scmp.ne.s32.totalorder %s88, %s89
      %p101 = scmp.eq.s32.totalorder %s18, 1
      %p102 = por %p100, %p101
      %p104 = scmp.ne.s32.totalorder %s89, %s103
      %p105 = scmp.eq.s32.totalorder %s18, 0
      %p106 = por %p104, %p105
      %s107 = ssub.s32 %s19, %s31
      %p108 = scmp.eq.s32.totalorder %s107, 0
      %s110 = sadd.s32 %s109, 1
      %s111 = scalar_select %p108, %s109, %s110
      %p114 = pneg %p108
      %p115 = scmp.eq.s32.totalorder %s12, 1
      %p116 = por %p114, %p115
      %p117 = scmp.ne.s32.totalorder %s109, %s112
      %p118 = scmp.eq.s32.totalorder %s12, 0
      %p119 = por %p117, %p118
      %p120 = scmp.ne.s32.totalorder %s109, %s112
      %p121 = scmp.eq.s32.totalorder %s17, 1
      %p122 = por %p120, %p121
      %p123 = scmp.ne.s32.totalorder %s112, %s113
      %p124 = scmp.eq.s32.totalorder %s17, 0
      %p125 = por %p123, %p124
      %p126 = scmp.ne.s32.totalorder %s112, %s113
      %p127 = scmp.eq.s32.totalorder %s18, 1
      %p128 = por %p126, %p127
      %p130 = scmp.ne.s32.totalorder %s113, %s129
      %p131 = scmp.eq.s32.totalorder %s18, 0
      %p132 = por %p130, %p131
      %p133 = scmp.le.s32.totalorder 1, %s12
      %p134 = scmp.lt.s32.totalorder %s12, 3
      %p135 = pnand %p133, %p134
      %p136 = pneg %p135
      // Predicated region
      $region9: #{tpu_custom_call.1} parent=5 // pred_check
        _
      $region10: #{tpu_custom_call.1} parent=5 // pred_check_branch
        %138 = sbr.rel (%p135) target = $region12
      $region11: #{tpu_custom_call.1} parent=5 // pred_region
        %s139 = ssub.s32 %s12, 1
        // Predicated region
        $region13: #{tpu_custom_call.1} parent=11 // pred_check
          %p140 = pneg %p78
        $region14: #{tpu_custom_call.1} parent=11 // pred_check_branch
          %142 = sbr.rel (%p140) target = $region16
        $region15: #{tpu_custom_call.1} parent=11 // pred_region
          %s143 = smul.u32 8, %s22
          %p144 = scmp.lt.s32.totalorder %s143, 7
          %s145 = scalar_select %p144, %s143, 7
          %s146 = smul.addr %s145, 4
          %s147 = scalar_lea.vmem %s1, %s146
          %s148 = smul.u32 8, %s22
        $region16: #{tpu_custom_call.1} parent=11 // pred_fallthru
          _
        // Predicated region
        $region17: #{tpu_custom_call.1} parent=11 // pred_check
          %p149 = pneg %p99
        $region18: #{tpu_custom_call.1} parent=11 // pred_check_branch
          %151 = sbr.rel (%p149) target = $region20
        $region19: #{tpu_custom_call.1} parent=11 // pred_region
          _
        $region20: #{tpu_custom_call.1} parent=11 // pred_fallthru
          _
      $region12: #{tpu_custom_call.1} parent=5 // pred_fallthru
        _
      %p152 = scmp.lt.s32.totalorder %s12, 2
      // Predicated region
      $region21: #{tpu_custom_call.1} parent=5 // pred_check
        %p153 = pneg %p152
      $region22: #{tpu_custom_call.1} parent=5 // pred_check_branch
        %155 = sbr.rel (%p153) target = $region24
      $region23: #{tpu_custom_call.1} parent=5 // pred_region
        // Predicated region
        $region25: #{tpu_custom_call.1} parent=23 // pred_check
          %p156 = pneg %p46
        $region26: #{tpu_custom_call.1} parent=23 // pred_check_branch
          %158 = sbr.rel (%p156) target = $region28
        $region27: #{tpu_custom_call.1} parent=23 // pred_region
          %s159 = smul.u32 2, %s19
          %p160 = scmp.lt.s32.totalorder %s159, 3
          %s161 = scalar_select %p160, %s159, 3
          %p162 = scmp.lt.s32.totalorder %s20, 0
          %s163 = scalar_select %p162, %s20, 0
          %s164 = sadd.s32 %s163, %s161
          %s165 = smul.addr %s164, 4
          %s166 = scalar_lea.vmem %s0, %s165
          %s167 = smul.u32 2, %s19
        $region28: #{tpu_custom_call.1} parent=23 // pred_fallthru
          _
      $region24: #{tpu_custom_call.1} parent=5 // pred_fallthru
        _
      %p168 = scmp.le.s32.totalorder 1, %s12
      %p169 = scmp.lt.s32.totalorder %s12, 3
      %p170 = pnand %p168, %p169
      %p171 = pneg %p170
      // Predicated region
      $region29: #{tpu_custom_call.1} parent=5 // pred_check
        _
      $region30: #{tpu_custom_call.1} parent=5 // pred_check_branch
        %173 = sbr.rel (%p170) target = $region32
      $region31: #{tpu_custom_call.1} parent=5 // pred_region
        %s174 = ssub.s32 %s12, 1
        %s175 = smul.u32 2, %s21
        %p176 = scmp.lt.s32.totalorder %s175, 3
        %s177 = scalar_select %p176, %s175, 3
        %p178 = scmp.lt.s32.totalorder %s22, 0
        %s179 = scalar_select %p178, %s22, 0
        %s180 = sadd.s32 %s179, %s177
        %s181 = smul.addr %s180, 4
        %s182 = scalar_lea.vmem %s0, %s181
        %p183 = pneg %p52
        %p184 = pneg %p49
        %s185 = smul.u32 8, %s22
        %p186 = scmp.lt.s32.totalorder %s185, 7
        %s187 = scalar_select %p186, %s185, 7
        %s188 = smul.addr %s187, 4
        %s189 = scalar_lea.vmem %s1, %s188
        %p190 = pneg %p78
        %p191 = pneg %p75
        %p192 = pneg %p99
        %p193 = pneg %p96
        %p194 = pneg %p125
        %p195 = pneg %p122
        %s196 = sand.u32 %s112, 1
        %s197 = scalar_lea.sflag [#allocation4], %s196
        %s198 = sand.u32 %s112, 1
        %s199 = smul.addr %s198, 16
        %s200 = scalar_lea.vmem [#allocation3], %s199
        %s201 = smul.u32 2, %s21
        %p202 = scmp.lt.s32.totalorder %s201, 3
        %s203 = scalar_select %p202, %s201, 3
        %p204 = scmp.lt.s32.totalorder %s22, 0
        %s205 = scalar_select %p204, %s22, 0
        %s206 = sadd.s32 %s205, %s203
        %s207 = smul.addr %s206, 4
        %s208 = scalar_lea.vmem %s0, %s207
        %s209 = smul.u32 2, %s21
        %s210 = smul.u32 8, %s22
        %p211 = scmp.lt.s32.totalorder %s210, 7
        %s212 = scalar_select %p211, %s210, 7
        %s213 = smul.addr %s212, 4
        %s214 = scalar_lea.vmem %s1, %s213
        %s215 = smul.u32 8, %s22
        %s216 = smul.u32 2, %s21
        %v218 = vld [vmem:[%s208] sm:$0xf]
        %v219 = vld [vmem:[%s208 + $0x4] sm:$0xf]
        %v220 = vld [vmem:[%s214] sm:$0xf]
        %v221 = vld [vmem:[%s214 + $0x4] sm:$0xf]
        %v222 = vld [vmem:[%s214 + $0x8] sm:$0xf]
        %v223 = vld [vmem:[%s214 + $0xc] sm:$0xf]
        %v224 = vld [vmem:[%s214 + $0x10] sm:$0xf]
        %v225 = vld [vmem:[%s214 + $0x14] sm:$0xf]
        %v226 = vld [vmem:[%s214 + $0x18] sm:$0xf]
        %v227 = vld [vmem:[%s214 + $0x1c] sm:$0xf]
        %v230 = vunpack.c.l.b16 %v218
        %v231 = vunpack.c.l.b16 %v219
        %v232 = vpack.c.b16 %v231, %v230
        %v241 = vunpack.c.l.b16 %v220
        %v242 = vunpack.c.l.b16 %v221
        %v243 = vunpack.c.l.b16 %v222
        %v244 = vunpack.c.l.b16 %v223
        %v245 = vunpack.c.l.b16 %v224
        %v246 = vunpack.c.l.b16 %v225
        %v247 = vunpack.c.l.b16 %v226
        %v248 = vunpack.c.l.b16 %v227
        %v249 = vpack.c.b16 %v242, %v241
        %v250 = vpack.c.b16 %v244, %v243
        %v251 = vpack.c.b16 %v246, %v245
        %v252 = vpack.c.b16 %v248, %v247
        %vm257 = vcmask 523264
        %v259 = vsel %vm257, %v232, 0
        %261 = vmatprep.subr.bf16.mxu0 0
        %262 = vmatpush1.bf16.msra.mxu0 %v249
        %263 = vmatprep.subr.bf16.mxu0 0
        %264 = vmatpush1.bf16.msra.mxu0 %v250
        %265 = vmatprep.subr.bf16.mxu0 0
        %266 = vmatpush1.bf16.msra.mxu0 %v251
        %267 = vmatprep.subr.bf16.mxu0 0
        %268 = vmatpush1.bf16.msra.mxu0 %v252
        %269 = vmatprep.subr.bf16.mxu0 0
        %270 = vmatpush1.bf16.msra.mxu0 0
        %271 = vmatprep.subr.bf16.mxu0 0
        %272 = vmatpush1.bf16.msra.mxu0 0
        %273 = vmatprep.subr.bf16.mxu0 0
        %274 = vmatpush1.bf16.msra.mxu0 0
        %275 = vmatprep.subr.bf16.mxu0 0
        %276 = vmatpush1.bf16.msra.mxu0 0
        %277 = vmatprep.subr.bf16.mxu0 0
        %278 = vmatpush1.bf16.msra.mxu0 0
        %279 = vmatprep.subr.bf16.mxu0 0
        %280 = vmatpush1.bf16.msra.mxu0 0
        %281 = vmatprep.subr.bf16.mxu0 0
        %282 = vmatpush1.bf16.msra.mxu0 0
        %283 = vmatprep.subr.bf16.mxu0 0
        %284 = vmatpush1.bf16.msra.mxu0 0
        %285 = vmatprep.subr.bf16.mxu0 0
        %286 = vmatpush1.bf16.msra.mxu0 0
        %287 = vmatprep.subr.bf16.mxu0 0
        %288 = vmatpush1.bf16.msra.mxu0 0
        %289 = vmatprep.subr.bf16.mxu0 0
        %290 = vmatpush1.bf16.msra.mxu0 0
        %291 = vmatprep.subr.bf16.mxu0 0
        %292 = vmatpush1.bf16.msra.mxu0 0
        %293 = vmatprep.mubr.bf16.mxu0 0
        %294 = vmatmul.mubr.bf16.gmra.mrb[0].mxu0 %v259
        %v295 = vpop.f32.mrb[0].mxu0
        %v296 = vadd.f32 0.0, %v295
        %v297 = vpop.f32.mrb[0].mxu0
        %v298 = vpop.f32.mrb[0].mxu0
        %v299 = vadd.f32 0.0, %v298
        %v300 = vpop.f32.mrb[0].mxu0
        %301 = vdwg.mxu0
        %p302 = scmp.eq.s32.totalorder %s22, 0
        // Predicated region
        $region33: #{tpu_custom_call.1} parent=31 // pred_check
          %p303 = pneg %p302
        $region34: #{tpu_custom_call.1} parent=31 // pred_check_branch
          %305 = sbr.rel (%p303) target = $region36
        $region35: #{tpu_custom_call.1} parent=31 // pred_region
          %v306 = vld [vmem:[%s2] sm:$0xff]
          %v307 = vadd.f32 %v296, %v306
          %v308 = vadd.f32 %v299, %v306
          %vm309 = vcmask 261120
          %310 = vst.msk [vmem:[#allocation2] sm:$0xff] %vm309, %v307
          %311 = vst.msk [vmem:[#allocation2 + $0x8] sm:$0xff] %vm309, %v308
        $region36: #{tpu_custom_call.1} parent=31 // pred_fallthru
          _
        %p312 = scmp.gt.s32.totalorder %s22, 0
        // Predicated region
        $region37: #{tpu_custom_call.1} parent=31 // pred_check
          %p313 = pneg %p312
        $region38: #{tpu_custom_call.1} parent=31 // pred_check_branch
          %315 = sbr.rel (%p313) target = $region40
        $region39: #{tpu_custom_call.1} parent=31 // pred_region
          %v316 = vld [vmem:[#allocation2] sm:$0xff]
          %v317 = vld [vmem:[#allocation2 + $0x8] sm:$0xff]
          %v318 = vadd.f32 %v316, %v296
          %v319 = vadd.f32 %v317, %v299
          %vm320 = vcmask 261120
          %321 = vst.msk [vmem:[#allocation2] sm:$0xff] %vm320, %v318
          %322 = vst.msk [vmem:[#allocation2 + $0x8] sm:$0xff] %vm320, %v319
        $region40: #{tpu_custom_call.1} parent=31 // pred_fallthru
          _
        // Predicated region
        $region41: #{tpu_custom_call.1} parent=31 // pred_check
          %p323 = pneg %p302
        $region42: #{tpu_custom_call.1} parent=31 // pred_check_branch
          %325 = sbr.rel (%p323) target = $region44
        $region43: #{tpu_custom_call.1} parent=31 // pred_region
          %v326 = vld [vmem:[#allocation2] sm:$0xff]
          %v327 = vld [vmem:[#allocation2 + $0x8] sm:$0xff]
          %vm328 = vcmask 261120
          %329 = vst.msk [vmem:[%s200] sm:$0xff] %vm328, %v326
          %330 = vst.msk [vmem:[%s200 + $0x8] sm:$0xff] %vm328, %v327
        $region44: #{tpu_custom_call.1} parent=31 // pred_fallthru
          _
        %s331 = sand.u32 %s112, 1
        %s332 = scalar_lea.sflag [#allocation4], %s331
        %s333 = sand.u32 %s112, 1
        %s334 = smul.addr %s333, 16
        %s335 = scalar_lea.vmem [#allocation3], %s334
        // Predicated region
        $region45: #{tpu_custom_call.1} parent=31 // pred_check
          %p336 = pneg %p122
        $region46: #{tpu_custom_call.1} parent=31 // pred_check_branch
          %338 = sbr.rel (%p336) target = $region48
        $region47: #{tpu_custom_call.1} parent=31 // pred_region
          %s339 = smul.u32 2, %s21
          %s341 = ssub.s32 256, 256
          %342 = vsyncadd %s332, %s341
          %s343 = smul.addr %s339, 128
          %s344 = scalar_lea.hbm %s3, %s343
          %s345 = sshll.u32 %s335, 4
          %s346 = int_to_ptr.vmem [resolvable:$true] %s345
          %351 = dma.vmem_to_hbm [thread:$0]  %s346, 256, %s344, %s332, 128, 128, 8
        $region48: #{tpu_custom_call.1} parent=31 // pred_fallthru
          _
      $region32: #{tpu_custom_call.1} parent=5 // pred_fallthru
        _
      %p352 = scmp.le.s32.totalorder 2, %s12
      // Predicated region
      $region49: #{tpu_custom_call.1} parent=5 // pred_check
        %p353 = pneg %p352
      $region50: #{tpu_custom_call.1} parent=5 // pred_check_branch
        %355 = sbr.rel (%p353) target = $region52
      $region51: #{tpu_custom_call.1} parent=5 // pred_region
        %s356 = ssub.s32 %s12, 2
        // Predicated region
        $region53: #{tpu_custom_call.1} parent=51 // pred_check
          %p357 = pneg %p128
        $region54: #{tpu_custom_call.1} parent=51 // pred_check_branch
          %359 = sbr.rel (%p357) target = $region56
        $region55: #{tpu_custom_call.1} parent=51 // pred_region
          %s360 = sand.u32 %s113, 1
          %s361 = scalar_lea.sflag [#allocation4], %s360
          %s362 = sand.u32 %s113, 1
          %s363 = smul.addr %s362, 16
          %s364 = scalar_lea.vmem [#allocation3], %s363
          %365 = dma.done %s361, 256
        $region56: #{tpu_custom_call.1} parent=51 // pred_fallthru
          _
      $region52: #{tpu_custom_call.1} parent=5 // pred_fallthru
        _
    $region6: #{tpu_custom_call.1} parent=1 // loop_footer
      %s16 = sadd.s32 1, %s12
    $region7: #{tpu_custom_call.1} parent=1 // loop_footer_branch
      %11 = sbr.rel target = $region3
    $region8: #{tpu_custom_call.1} parent=1 // loop_exit
      _
    %366 = vsyncpa [#allocation4], 1
    %s367 = scalar_lea.sflag [#allocation4], 1
    %368 = vsyncpa %s367, 1

</llo_original>
